<compile_context>
chip_gen: v7x
topology: tpu7x:2x2x1
jax: 0.10.0
libtpu: 0.0.40
codegen_flags: <defaults>
</compile_context>

<pallas_src>
import jax
import jax.numpy as jnp
from jax.experimental import pallas as pl
from jax.experimental.pallas import tpu as pltpu


def _jsloss_kernel(x1_ref, x2_ref, out_ref):
    j = pl.program_id(1)

    # Zero the resident lane-parallel accumulator at the start of the reduction axis.
    @pl.when(j == 0)
    def _():
        out_ref[...] = jnp.zeros_like(out_ref)

    x1 = x1_ref[...].astype(jnp.float32)
    x2 = x2_ref[...].astype(jnp.float32)

    # Numerically stable softmax pieces over axis 0 (sublane axis).
    m1 = jnp.max(x1, axis=0, keepdims=True)
    m2 = jnp.max(x2, axis=0, keepdims=True)
    d1 = x1 - m1
    d2 = x2 - m2
    e1 = jnp.exp(d1)
    e2 = jnp.exp(d2)
    s1 = jnp.sum(e1, axis=0, keepdims=True)
    s2 = jnp.sum(e2, axis=0, keepdims=True)

    # sum_i p1_i*(logp1_i - logp2_i) = (1/s1)*sum_i e1_i*(d1_i - d2_i) + log(s2) - log(s1)
    # Only a per-column (1, block_c) reciprocal/log; no full-tile divide or logp tiles.
    num = jnp.sum(e1 * (d1 - d2), axis=0, keepdims=True)
    partial = num * pl.reciprocal(s1, approx=True) + (jnp.log(s2) - jnp.log(s1))

    # Sublane-reduced lane-parallel partial sums; the expensive cross-lane reduce to a
    # scalar is done once, outside the kernel, on the tiny partial-sum output.
    out_ref[...] += partial.reshape(out_ref.shape)


def _vmem_capacity_bytes():
    """Per-TensorCore VMEM capacity; conservative fallback is v7x's 64 MiB."""
    try:
        cap = getattr(pltpu.get_tpu_info(), "vmem_capacity_bytes", None)
        if cap:
            return int(cap)
    except Exception:
        pass
    return 64 * 1024 * 1024


def _num_tensorcores():
    """2 on multi-TensorCore chips (v7x, and megacore v4/v5p), else 1."""
    try:
        kind = jax.devices()[0].device_kind.lower()
    except Exception:
        return 1
    return 2 if any(t in kind for t in ("v7", "7x", "v4", "v5p")) else 1


def _pick_block_c(n, c, itemsize, vmem_bytes):
    """Size block_c directly from the VMEM budget (no fixed lane cap).

    Footprint per grid step: 2 inputs x 2 pipeline buffers of (n, block_c) at `itemsize`
    bytes plus roughly 6 compiler-materialized full-tile f32 temporaries.  Half of the
    per-core VMEM is budgeted for this footprint.
    """
    footprint_budget = vmem_bytes // 2
    per_col = n * (4 * itemsize + 6 * 4)
    desired = (footprint_budget // per_col) // 128 * 128
    # TODO(synk): if N is so large that even a 128-lane tile busts the budget, an online
    # (two-pass) softmax over tiled N would be required; fall back to 128 lanes here.
    desired = max(desired, 128)

    c128 = pl.cdiv(c, 128) * 128
    desired = min(desired, c128)
    num_blocks = pl.cdiv(c128, desired)
    # Balance the blocks so padding waste is < num_blocks lanes-of-128.
    block_c = pl.cdiv(c128 // 128, num_blocks) * 128
    c_padded = num_blocks * block_c
    return block_c, num_blocks, c_padded


def jsloss(net_1_logits, net_2_logits, *, block_c=None, wire_dtype=None):
    """Pallas TPU implementation of the jsloss module forward pass."""
    assert net_1_logits.shape == net_2_logits.shape
    assert net_1_logits.ndim == 2, "expects (N, C) logits; softmax/batchmean over dim 0"
    n, c = net_1_logits.shape

    if wire_dtype is not None:
        # Optional bandwidth-saving cast for f32 callers (kernel math stays f32).
        net_1_logits = net_1_logits.astype(wire_dtype)
        net_2_logits = net_2_logits.astype(wire_dtype)

    itemsize = max(jnp.dtype(net_1_logits.dtype).itemsize,
                   jnp.dtype(net_2_logits.dtype).itemsize)
    vmem_bytes = _vmem_capacity_bytes()

    if block_c is None:
        block_c, num_blocks, c_padded = _pick_block_c(n, c, itemsize, vmem_bytes)
    else:
        assert block_c % 128 == 0, "block_c must be a multiple of 128"
        c128 = pl.cdiv(c, 128) * 128
        block_c = min(block_c, c128)
        num_blocks = pl.cdiv(c128, block_c)
        c_padded = num_blocks * block_c

    # Pad ragged C with identical zero columns in both inputs: padded columns have
    # x1 == x2 column-wise, so their per-column contribution is exactly zero.
    if c_padded != c:
        pad = ((0, 0), (0, c_padded - c))
        net_1_logits = jnp.pad(net_1_logits, pad)
        net_2_logits = jnp.pad(net_2_logits, pad)

    # Split the independent C range across TensorCores only on multi-TC chips; on
    # single-TC v5e/v6e the split would just be a serial outer loop plus an extra slab.
    num_splits = 2 if (_num_tensorcores() >= 2 and num_blocks >= 2 and num_blocks % 2 == 0) else 1
    steps_per_split = num_blocks // num_splits

    in_spec = pl.BlockSpec((n, block_c), lambda i, j: (0, i * steps_per_split + j))
    # One resident (1, block_c) partial-sum slab per split (accumulator-in-output).
    out_spec = pl.BlockSpec((1, 1, block_c), lambda i, j: (i, 0, 0))

    # Raise the scoped-VMEM limit past the 16/32 MiB defaults so the larger tiles fit;
    # leave a margin below physical capacity.
    vmem_limit = int(max(32 * 1024 * 1024, vmem_bytes - 16 * 1024 * 1024))

    # Pure streaming kernel: accurate bytes / transcendental counts help XLA schedule
    # surrounding ops when this loss is fused into a larger step.
    cost = pl.CostEstimate(
        flops=8 * n * c_padded,
        transcendentals=2 * n * c_padded,
        bytes_accessed=2 * n * c_padded * itemsize + num_splits * block_c * 4,
    )

    partials = pl.pallas_call(
        _jsloss_kernel,
        out_shape=jax.ShapeDtypeStruct((num_splits, 1, block_c), jnp.float32),
        grid=(num_splits, steps_per_split),
        in_specs=[in_spec, in_spec],
        out_specs=out_spec,
        compiler_params=pltpu.CompilerParams(
            dimension_semantics=("parallel", "arbitrary"),
            vmem_limit_bytes=vmem_limit),
        cost_estimate=cost,
    )(net_1_logits, net_2_logits)

    # batchmean divisor is dim 0 (N); loss = 0.5 * (kl1 + kl2) / N with kl1 == 0.
    return 0.5 * jnp.sum(partials) / jnp.float32(n)


def _jsloss_ref(x1, x2):
    # Pure-JAX reference mirroring the torch module (kl_div uses xlogy semantics).
    x1 = x1.astype(jnp.float32)
    x2 = x2.astype(jnp.float32)
    p1 = jax.nn.softmax(x1, axis=0)
    logp1 = jax.nn.log_softmax(x1, axis=0)
    logp2 = jax.nn.log_softmax(x2, axis=0)
    m = 0.5 * (p1 + p1)
    n = x1.shape[0]

    def kl_div_batchmean(logq, t):
        xlogy = jnp.where(t > 0, t * jnp.log(t), 0.0)
        return jnp.sum(xlogy - t * logq) / n

    return 0.5 * (kl_div_batchmean(logp1, m) + kl_div_batchmean(logp2, m))


if __name__ == "__main__":
    key = jax.random.PRNGKey(0)
    k1, k2, k3, k4, k5, k6 = jax.random.split(key, 6)

    # 1) f32, forced small C tile -> multi-step reduction grid (and 2-way TC split on
    #    multi-core chips): exercises accumulation along the "arbitrary" axis.
    a1 = jax.random.normal(k1, (8, 512), dtype=jnp.float32)
    a2 = jax.random.normal(k2, (8, 512), dtype=jnp.float32)
    ref_a = _jsloss_ref(a1, a2)
    out_a = jax.block_until_ready(jsloss(a1, a2, block_c=128))
    assert jnp.allclose(out_a, ref_a, rtol=1e-3, atol=1e-5), (out_a, ref_a)

    # 1b) same inputs, auto (VMEM-budget-sized) tile: must agree with the tiled run.
    out_a1 = jax.block_until_ready(jsloss(a1, a2))
    assert jnp.allclose(out_a1, ref_a, rtol=1e-3, atol=1e-5), (out_a1, ref_a)

    # 2) bf16 logits on the wire (f32 math inside), ragged-ish C tiled at 128.
    b1 = jax.random.normal(k3, (16, 384), dtype=jnp.bfloat16)
    b2 = jax.random.normal(k4, (16, 384), dtype=jnp.bfloat16)
    ref_b = _jsloss_ref(b1, b2)
    out_b = jax.block_until_ready(jsloss(b1, b2, block_c=128))
    assert jnp.allclose(out_b, ref_b, rtol=1e-3, atol=1e-5), (out_b, ref_b)

    # 3) C not a multiple of 128: zero-column padding path.
    c1 = jax.random.normal(k5, (8, 96), dtype=jnp.float32)
    c2 = jax.random.normal(k6, (8, 96), dtype=jnp.float32)
    ref_c = _jsloss_ref(c1, c2)
    out_c = jax.block_until_ready(jsloss(c1, c2))
    assert jnp.allclose(out_c, ref_c, rtol=1e-3, atol=1e-5), (out_c, ref_c)

    # 4) f32 caller opting into a bf16 wire (bandwidth mode): looser tolerance.
    out_d = jax.block_until_ready(jsloss(a1, a2, wire_dtype=jnp.bfloat16))
    assert jnp.allclose(out_d, ref_a, rtol=5e-2, atol=1e-3), (out_d, ref_a)

    print("KERNEL_OK")
</pallas_src>

<mosaic_0001>
module attributes {stable_mosaic.version = 11 : i64} {
  func.func @_jsloss_kernel(%arg0: i32, %arg1: i32, %arg2: memref<8x128xf32, #tpu.memory_space<vmem>>, %arg3: memref<8x128xf32, #tpu.memory_space<vmem>>, %arg4: memref<1x1x128xf32, #tpu.memory_space<vmem>>) attributes {dimension_semantics = [#tpu.dimension_semantics<parallel>, #tpu.dimension_semantics<arbitrary>], iteration_bounds = array<i64: 1, 4>, scalar_prefetch = 0 : i64, scratch_operands = 0 : i64, tpu.core_type = #tpu.core_type<tc>, window_params = [{transform_indices = @transform_0, window_bounds = array<i64: 8, 128>}, {transform_indices = @transform_1, window_bounds = array<i64: 8, 128>}, {transform_indices = @transform_2, window_bounds = array<i64: 1, 1, 128>}]} {
    %c0_i32 = arith.constant 0 : i32
    %0 = arith.cmpi eq, %arg1, %c0_i32 : i32
    %1 = arith.extui %0 : i1 to i32
    %c0_i32_0 = arith.constant 0 : i32
    %2 = arith.cmpi ne, %1, %c0_i32_0 : i32
    scf.if %2 {
      %cst_14 = arith.constant 0.000000e+00 : f32
      %33 = vector.broadcast %cst_14 : f32 to vector<1x1x128xf32>
      %c0_15 = arith.constant 0 : index
      %c0_16 = arith.constant 0 : index
      %c0_17 = arith.constant 0 : index
      %34 = vector.load %arg4[%c0_15, %c0_16, %c0_17] : memref<1x1x128xf32, #tpu.memory_space<vmem>>, vector<1x1x128xf32>
      tpu.vector_store %arg4[%c0_15, %c0_16, %c0_17], %33 {strides = array<i32>} : memref<1x1x128xf32, #tpu.memory_space<vmem>>, vector<1x1x128xf32>,
    } else {
    }
    %c0 = arith.constant 0 : index
    %c0_1 = arith.constant 0 : index
    %3 = vector.load %arg2[%c0, %c0_1] : memref<8x128xf32, #tpu.memory_space<vmem>>, vector<8x128xf32>
    %c0_2 = arith.constant 0 : index
    %c0_3 = arith.constant 0 : index
    %4 = vector.load %arg3[%c0_2, %c0_3] : memref<8x128xf32, #tpu.memory_space<vmem>>, vector<8x128xf32>
    %cst = arith.constant dense<0xFF800000> : vector<128xf32>
    %5 = vector.multi_reduction <maximumf>, %3, %cst [0] : vector<8x128xf32> to vector<128xf32>
    %6 = vector.shape_cast %5 : vector<128xf32> to vector<1x128xf32>
    %cst_4 = arith.constant dense<0xFF800000> : vector<128xf32>
    %7 = vector.multi_reduction <maximumf>, %4, %cst_4 [0] : vector<8x128xf32> to vector<128xf32>
    %8 = vector.shape_cast %7 : vector<128xf32> to vector<1x128xf32>
    %9 = vector.broadcast %6 : vector<1x128xf32> to vector<8x128xf32>
    %10 = arith.subf %3, %9 : vector<8x128xf32>
    %11 = vector.broadcast %8 : vector<1x128xf32> to vector<8x128xf32>
    %12 = arith.subf %4, %11 : vector<8x128xf32>
    %13 = math.exp %10 : vector<8x128xf32>
    %14 = math.exp %12 : vector<8x128xf32>
    %cst_5 = arith.constant dense<0.000000e+00> : vector<128xf32>
    %15 = vector.multi_reduction <add>, %13, %cst_5 [0] : vector<8x128xf32> to vector<128xf32>
    %16 = vector.shape_cast %15 : vector<128xf32> to vector<1x128xf32>
    %cst_6 = arith.constant dense<0.000000e+00> : vector<128xf32>
    %17 = vector.multi_reduction <add>, %14, %cst_6 [0] : vector<8x128xf32> to vector<128xf32>
    %18 = vector.shape_cast %17 : vector<128xf32> to vector<1x128xf32>
    %19 = arith.subf %10, %12 : vector<8x128xf32>
    %20 = arith.mulf %13, %19 : vector<8x128xf32>
    %cst_7 = arith.constant dense<0.000000e+00> : vector<128xf32>
    %21 = vector.multi_reduction <add>, %20, %cst_7 [0] : vector<8x128xf32> to vector<128xf32>
    %22 = vector.shape_cast %21 : vector<128xf32> to vector<1x128xf32>
    %23 = tpu.reciprocal %16 {approx = true} : vector<1x128xf32> -> vector<1x128xf32>
    %24 = arith.mulf %22, %23 : vector<1x128xf32>
    %25 = math.log %18 : vector<1x128xf32>
    %26 = math.log %16 : vector<1x128xf32>
    %27 = arith.subf %25, %26 : vector<1x128xf32>
    %28 = arith.addf %24, %27 : vector<1x128xf32>
    %c0_8 = arith.constant 0 : index
    %c0_9 = arith.constant 0 : index
    %c0_10 = arith.constant 0 : index
    %29 = vector.load %arg4[%c0_8, %c0_9, %c0_10] : memref<1x1x128xf32, #tpu.memory_space<vmem>>, vector<1x1x128xf32>
    %30 = vector.shape_cast %28 : vector<1x128xf32> to vector<1x1x128xf32>
    %31 = arith.addf %29, %30 : vector<1x1x128xf32>
    %c0_11 = arith.constant 0 : index
    %c0_12 = arith.constant 0 : index
    %c0_13 = arith.constant 0 : index
    %32 = vector.load %arg4[%c0_11, %c0_12, %c0_13] : memref<1x1x128xf32, #tpu.memory_space<vmem>>, vector<1x1x128xf32>
    tpu.vector_store %arg4[%c0_11, %c0_12, %c0_13], %31 {strides = array<i32>} : memref<1x1x128xf32, #tpu.memory_space<vmem>>, vector<1x1x128xf32>,
    return
  }
  func.func @transform_0(%arg0: i32, %arg1: i32) -> (i32, i32) {
    %c4_i32 = arith.constant 4 : i32
    %0 = arith.muli %arg0, %c4_i32 : i32
    %1 = arith.addi %0, %arg1 : i32
    %c0_i32 = arith.constant 0 : i32
    %c0_i32_0 = arith.constant 0 : i32
    return %c0_i32, %1 : i32, i32
  }
  func.func @transform_1(%arg0: i32, %arg1: i32) -> (i32, i32) {
    %c4_i32 = arith.constant 4 : i32
    %0 = arith.muli %arg0, %c4_i32 : i32
    %1 = arith.addi %0, %arg1 : i32
    %c0_i32 = arith.constant 0 : i32
    %c0_i32_0 = arith.constant 0 : i32
    return %c0_i32, %1 : i32, i32
  }
  func.func @transform_2(%arg0: i32, %arg1: i32) -> (i32, i32, i32) {
    %c0_i32 = arith.constant 0 : i32
    %c0_i32_0 = arith.constant 0 : i32
    %c0_i32_1 = arith.constant 0 : i32
    return %arg0, %c0_i32, %c0_i32_0 : i32, i32, i32
  }
}

</mosaic_0001>

<llo_original>
// kernel: tpu_custom_call.1
$region0: #{tpu_custom_call.1}
  #allocation0 [shape = 'u32[]', space=smem, size = 0x4, offset = 0x4, fixed_abs, tag = 'smem constant byte address 0x4 - core index']
  #allocation1 [shape = 'u32[144,128]{1,0:T(1,128)}', space=vmem, size = 0x12000, scoped, tag = 'internal scratch']
  %s0 = inlined_call_operand.hbm [shape: f32[8,512], index: 0, kind: input, shape index: {}]
  %s1 = inlined_call_operand.hbm [shape: f32[8,512], index: 1, kind: input, shape index: {}]
  %s2 = inlined_call_operand.hbm [shape: f32[1,1,128], index: 2, kind: output, shape index: {}]
  %s3 = sld [smem:[#allocation0]]
  $region53: #{tpu_custom_call.1} parent=0
    _
  %s5 = ssub.s32 1, %s3
  %s6 = scalar_select 0, %s5, %s3
  $region1: #{tpu_custom_call.1} parent=0
    #allocation2 [shape = 'u8[8192]{0}', space=vmem, size = 0x2000, scoped, tag = 'input window, operand 0']
    #allocation3 [shape = 's32[2]{0}', space=sflag, size = 0x8, scoped, tag = 'scoped memory for tpu_custom_call.1']
    #allocation4 [shape = 's32[2]{0}', space=sflag, size = 0x8, scoped, tag = 'scoped memory for tpu_custom_call.1']
    #allocation5 [shape = 'u8[8192]{0}', space=vmem, size = 0x2000, scoped, tag = 'input window, operand 1']
    #allocation6 [shape = 's32[2]{0}', space=sflag, size = 0x8, scoped, tag = 'scoped memory for tpu_custom_call.1']
    #allocation7 [shape = 'u8[512]{0}', space=vmem, size = 0x400, scoped, tag = 'output window, operand 0, single buffered']
    %7 = vsyncpa [#allocation3], 0
    %s8 = scalar_lea.sflag [#allocation3], 1
    %9 = vsyncpa %s8, 0
    %10 = vsyncpa [#allocation6], 0
    %s11 = scalar_lea.sflag [#allocation6], 1
    %12 = vsyncpa %s11, 0
    %13 = vsyncpa [#allocation4], 0
    loop: start=0, step=1, limit=6
    $region2: #{tpu_custom_call.1} parent=1 // loop_pre_header
      _
    $region3: #{tpu_custom_call.1} parent=1 // loop_header
      %s15 = sphi 0, %s19
      %p16 = scmp.ge.s32.totalorder %s15, 6
      %s22 = sphi 0, %s34
      %s23 = sphi 0, %s30
      %s24 = sphi 0, %s22
      %s25 = sphi 0, %s23
      %s26 = sphi 0, %s24
      %s27 = sphi 0, %s25
      %s41 = sphi 0, %s43
      %s44 = sphi 0, %s41
      %s45 = sphi 0, %s44
      %s61 = sphi 0, %s45
      %s71 = sphi 0, %s73
      %s74 = sphi 0, %s71
      %s75 = sphi 0, %s74
      %s91 = sphi 0, %s75
      %s97 = sphi 0, %s99
      %s100 = sphi 0, %s97
      %s101 = sphi 0, %s100
      %s117 = sphi 0, %s101
    $region4: #{tpu_custom_call.1} parent=1 // loop_header_branch
      %18 = sbr.rel (%p16) target = $region8
    $region5: #{tpu_custom_call.1} parent=1 // loop_body
      %s20 = ssub.s32 %s15, 1
      %s21 = ssub.s32 %s15, 2
      %s28 = sadd.s32 1, %s23
      %p29 = scmp.ge.s32.totalorder %s28, 4
      %s30 = scalar_select %p29, 0, %s28
      %s31 = sadd.s32 1, %s22
      %s32 = scalar_select %p29, %s31, %s22
      %p33 = scmp.ge.s32.totalorder %s32, 1
      %s34 = scalar_select %p33, 0, %s32
      %s35 = smul.u32 %s22, 4
      %s36 = sadd.s32 %s35, %s23
      %s37 = smul.u32 %s34, 4
      %s38 = sadd.s32 %s37, %s30
      %s39 = ssub.s32 %s36, %s38
      %p40 = scmp.eq.s32.totalorder %s39, 0
      %s42 = sadd.s32 %s41, 1
      %s43 = scalar_select %p40, %s41, %s42
      %p46 = pneg %p40
      %p47 = scmp.eq.s32.totalorder %s15, 3
      %p48 = por %p46, %p47
      %p49 = scmp.ne.s32.totalorder %s41, %s44
      %p50 = scmp.eq.s32.totalorder %s15, 0
      %p51 = por %p49, %p50
      %p52 = scmp.ne.s32.totalorder %s41, %s44
      %p53 = scmp.eq.s32.totalorder %s20, 3
      %p54 = por %p52, %p53
      %p55 = scmp.ne.s32.totalorder %s44, %s45
      %p56 = scmp.eq.s32.totalorder %s20, 0
      %p57 = por %p55, %p56
      %p58 = scmp.ne.s32.totalorder %s44, %s45
      %p59 = scmp.eq.s32.totalorder %s21, 3
      %p60 = por %p58, %p59
      %p62 = scmp.ne.s32.totalorder %s45, %s61
      %p63 = scmp.eq.s32.totalorder %s21, 0
      %p64 = por %p62, %p63
      %s65 = smul.u32 %s22, 4
      %s66 = sadd.s32 %s65, %s23
      %s67 = smul.u32 %s34, 4
      %s68 = sadd.s32 %s67, %s30
      %s69 = ssub.s32 %s66, %s68
      %p70 = scmp.eq.s32.totalorder %s69, 0
      %s72 = sadd.s32 %s71, 1
      %s73 = scalar_select %p70, %s71, %s72
      %p76 = pneg %p70
      %p77 = scmp.eq.s32.totalorder %s15, 3
      %p78 = por %p76, %p77
      %p79 = scmp.ne.s32.totalorder %s71, %s74
      %p80 = scmp.eq.s32.totalorder %s15, 0
      %p81 = por %p79, %p80
      %p82 = scmp.ne.s32.totalorder %s71, %s74
      %p83 = scmp.eq.s32.totalorder %s20, 3
      %p84 = por %p82, %p83
      %p85 = scmp.ne.s32.totalorder %s74, %s75
      %p86 = scmp.eq.s32.totalorder %s20, 0
      %p87 = por %p85, %p86
      %p88 = scmp.ne.s32.totalorder %s74, %s75
      %p89 = scmp.eq.s32.totalorder %s21, 3
      %p90 = por %p88, %p89
      %p92 = scmp.ne.s32.totalorder %s75, %s91
      %p93 = scmp.eq.s32.totalorder %s21, 0
      %p94 = por %p92, %p93
      %s95 = ssub.s32 %s22, %s34
      %p96 = scmp.eq.s32.totalorder %s95, 0
      %s98 = sadd.s32 %s97, 1
      %s99 = scalar_select %p96, %s97, %s98
      %p102 = pneg %p96
      %p103 = scmp.eq.s32.totalorder %s15, 3
      %p104 = por %p102, %p103
      %p105 = scmp.ne.s32.totalorder %s97, %s100
      %p106 = scmp.eq.s32.totalorder %s15, 0
      %p107 = por %p105, %p106
      %p108 = scmp.ne.s32.totalorder %s97, %s100
      %p109 = scmp.eq.s32.totalorder %s20, 3
      %p110 = por %p108, %p109
      %p111 = scmp.ne.s32.totalorder %s100, %s101
      %p112 = scmp.eq.s32.totalorder %s20, 0
      %p113 = por %p111, %p112
      %p114 = scmp.ne.s32.totalorder %s100, %s101
      %p115 = scmp.eq.s32.totalorder %s21, 3
      %p116 = por %p114, %p115
      %p118 = scmp.ne.s32.totalorder %s101, %s117
      %p119 = scmp.eq.s32.totalorder %s21, 0
      %p120 = por %p118, %p119
      %p121 = scmp.le.s32.totalorder 1, %s15
      %p122 = scmp.lt.s32.totalorder %s15, 5
      %p123 = pnand %p121, %p122
      %p124 = pneg %p123
      // Predicated region
      $region9: #{tpu_custom_call.1} parent=5 // pred_check
        _
      $region10: #{tpu_custom_call.1} parent=5 // pred_check_branch
        %126 = sbr.rel (%p123) target = $region12
      $region11: #{tpu_custom_call.1} parent=5 // pred_region
        %s127 = ssub.s32 %s15, 1
      $region12: #{tpu_custom_call.1} parent=5 // pred_fallthru
        _
      %p128 = scmp.lt.s32.totalorder %s15, 4
      // Predicated region
      $region13: #{tpu_custom_call.1} parent=5 // pred_check
        %p129 = pneg %p128
      $region14: #{tpu_custom_call.1} parent=5 // pred_check_branch
        %131 = sbr.rel (%p129) target = $region16
      $region15: #{tpu_custom_call.1} parent=5 // pred_region
        // Predicated region
        $region17: #{tpu_custom_call.1} parent=15 // pred_check
          %p132 = pneg %p51
        $region18: #{tpu_custom_call.1} parent=15 // pred_check_branch
          %134 = sbr.rel (%p132) target = $region20
        $region19: #{tpu_custom_call.1} parent=15 // pred_region
          %s135 = sand.u32 %s41, 1
          %s136 = scalar_lea.sflag [#allocation3], %s135
          %s137 = sand.u32 %s41, 1
          %s138 = smul.addr %s137, 8
          %s139 = scalar_lea.vmem [#allocation2], %s138
          %s140 = smul.u32 %s22, 4
          %s141 = sadd.s32 %s140, %s23
          %s143 = ssub.s32 128, 128
          %144 = vsyncadd %s136, %s143
          %s145 = smul.addr %s141, 128
          %s146 = scalar_lea.hbm %s0, %s145
          %s148 = sshll.u32 %s139, 4
          %s149 = int_to_ptr.vmem [resolvable:$true] %s148
          %151 = dma.hbm_to_vmem [thread:$0]  %s146, 128, %s149, %s136
        $region20: #{tpu_custom_call.1} parent=15 // pred_fallthru
          _
        // Predicated region
        $region21: #{tpu_custom_call.1} parent=15 // pred_check
          %p152 = pneg %p81
        $region22: #{tpu_custom_call.1} parent=15 // pred_check_branch
          %154 = sbr.rel (%p152) target = $region24
        $region23: #{tpu_custom_call.1} parent=15 // pred_region
          %s155 = sand.u32 %s71, 1
          %s156 = scalar_lea.sflag [#allocation6], %s155
          %s157 = sand.u32 %s71, 1
          %s158 = smul.addr %s157, 8
          %s159 = scalar_lea.vmem [#allocation5], %s158
          %s160 = smul.u32 %s22, 4
          %s161 = sadd.s32 %s160, %s23
          %s163 = ssub.s32 128, 128
          %164 = vsyncadd %s156, %s163
          %s165 = smul.addr %s161, 128
          %s166 = scalar_lea.hbm %s1, %s165
          %s168 = sshll.u32 %s159, 4
          %s169 = int_to_ptr.vmem [resolvable:$true] %s168
          %171 = dma.hbm_to_vmem [thread:$0]  %s166, 128, %s169, %s156
        $region24: #{tpu_custom_call.1} parent=15 // pred_fallthru
          _
      $region16: #{tpu_custom_call.1} parent=5 // pred_fallthru
        _
      %p172 = scmp.le.s32.totalorder 1, %s15
      %p173 = scmp.lt.s32.totalorder %s15, 5
      %p174 = pnand %p172, %p173
      %p175 = pneg %p174
      // Predicated region
      $region25: #{tpu_custom_call.1} parent=5 // pred_check
        _
      $region26: #{tpu_custom_call.1} parent=5 // pred_check_branch
        %177 = sbr.rel (%p174) target = $region28
      $region27: #{tpu_custom_call.1} parent=5 // pred_region
        %s178 = ssub.s32 %s15, 1
        %s179 = sand.u32 %s44, 1
        %s180 = scalar_lea.sflag [#allocation3], %s179
        %s181 = sand.u32 %s44, 1
        %s182 = smul.addr %s181, 8
        %s183 = scalar_lea.vmem [#allocation2], %s182
        // Predicated region
        $region29: #{tpu_custom_call.1} parent=27 // pred_check
          %p184 = pneg %p57
        $region30: #{tpu_custom_call.1} parent=27 // pred_check_branch
          %186 = sbr.rel (%p184) target = $region32
        $region31: #{tpu_custom_call.1} parent=27 // pred_region
          %187 = dma.done %s180, 128
        $region32: #{tpu_custom_call.1} parent=27 // pred_fallthru
          _
        %s188 = sand.u32 %s74, 1
        %s189 = scalar_lea.sflag [#allocation6], %s188
        %s190 = sand.u32 %s74, 1
        %s191 = smul.addr %s190, 8
        %s192 = scalar_lea.vmem [#allocation5], %s191
        // Predicated region
        $region33: #{tpu_custom_call.1} parent=27 // pred_check
          %p193 = pneg %p87
        $region34: #{tpu_custom_call.1} parent=27 // pred_check_branch
          %195 = sbr.rel (%p193) target = $region36
        $region35: #{tpu_custom_call.1} parent=27 // pred_region
          %196 = dma.done %s189, 128
        $region36: #{tpu_custom_call.1} parent=27 // pred_fallthru
          _
        %s197 = sand.u32 %s44, 1
        %s198 = scalar_lea.sflag [#allocation3], %s197
        %s199 = sand.u32 %s44, 1
        %s200 = smul.addr %s199, 8
        %s201 = scalar_lea.vmem [#allocation2], %s200
        %p202 = pneg %p57
        %p203 = pneg %p54
        %s204 = sand.u32 %s74, 1
        %s205 = scalar_lea.sflag [#allocation6], %s204
        %s206 = sand.u32 %s74, 1
        %s207 = smul.addr %s206, 8
        %s208 = scalar_lea.vmem [#allocation5], %s207
        %p209 = pneg %p87
        %p210 = pneg %p84
        %p211 = pneg %p113
        %p212 = pneg %p110
        %s213 = smul.u32 %s24, 4
        %s214 = sadd.s32 %s213, %s25
        %s215 = smul.u32 %s24, 4
        %s216 = sadd.s32 %s215, %s25
        %p217 = scmp.eq.s32.totalorder %s25, 0
        // Predicated region
        $region37: #{tpu_custom_call.1} parent=27 // pred_check
          %p218 = pneg %p217
        $region38: #{tpu_custom_call.1} parent=27 // pred_check_branch
          %220 = sbr.rel (%p218) target = $region40
        $region39: #{tpu_custom_call.1} parent=27 // pred_region
          %221 = vst [vmem:[#allocation7] sm:$0x1] 0.0
        $region40: #{tpu_custom_call.1} parent=27 // pred_fallthru
          _
        %v222 = vld [vmem:[%s183] sm:$0xff]
        %v223 = vld [vmem:[%s192] sm:$0xff]
        %v224 = vrot.slane %v222, 4
        %v225 = vmax.f32 %v222, %v224
        %v226 = vrot.slane %v225, 2
        %v227 = vmax.f32 %v225, %v226
        %v228 = vrot.slane %v227, 1
        %v229 = vmax.f32 %v227, %v228
        %v230 = vrot.slane %v223, 4
        %v231 = vmax.f32 %v223, %v230
        %v232 = vrot.slane %v231, 2
        %v233 = vmax.f32 %v231, %v232
        %v234 = vrot.slane %v233, 1
        %v235 = vmax.f32 %v233, %v234
        %v236 = vsub.f32 %v222, %v229
        %v237 = vsub.f32 %v223, %v235
        %v238 = vmul.f32 %v236, 1.442695
        %v239 = vpow.pop %v238
        %v240 = vmul.f32 %v237, 1.442695
        %v241 = vpow.pop %v240
        %v242 = vrot.slane %v239, 4
        %v243 = vadd.f32 %v239, %v242
        %v244 = vrot.slane %v243, 2
        %v245 = vadd.f32 %v243, %v244
        %v246 = vrot.slane %v245, 1
        %v247 = vadd.f32 %v245, %v246
        %v248 = vrot.slane %v241, 4
        %v249 = vadd.f32 %v241, %v248
        %v250 = vrot.slane %v249, 2
        %v251 = vadd.f32 %v249, %v250
        %v252 = vrot.slane %v251, 1
        %v253 = vadd.f32 %v251, %v252
        %v254 = vsub.f32 %v236, %v237
        %v255 = vmul.f32 %v239, %v254
        %v256 = vrot.slane %v255, 4
        %v257 = vadd.f32 %v255, %v256
        %v258 = vrot.slane %v257, 2
        %v259 = vadd.f32 %v257, %v258
        %v260 = vrot.slane %v259, 1
        %v261 = vadd.f32 %v259, %v260
        %v262 = vrcp.pop %v247
        %v263 = vmul.f32 %v261, %v262
        %v264 = vlog2.pop %v253
        %v265 = vmul.f32 %v264, 0.6931472
        %v266 = vlog2.pop %v247
        %v267 = vmul.f32 %v266, 0.6931472
        %v268 = vsub.f32 %v265, %v267
        %v269 = vadd.f32 %v263, %v268
        %v270 = vld [vmem:[#allocation7] sm:$0x1]
        %v271 = vadd.f32 %v270, %v269
        %272 = vst [vmem:[#allocation7] sm:$0x1] %v271
        // Predicated region
        $region41: #{tpu_custom_call.1} parent=27 // pred_check
          %p273 = pneg %p110
        $region42: #{tpu_custom_call.1} parent=27 // pred_check_branch
          %275 = sbr.rel (%p273) target = $region44
        $region43: #{tpu_custom_call.1} parent=27 // pred_region
          %s277 = ssub.s32 16, 16
          %278 = vsyncadd [#allocation4], %s277
          %s279 = smul.addr %s24, 16
          %s280 = scalar_lea.hbm %s2, %s279
          %s282 = sshll.u32 [#allocation7], 4
          %s283 = int_to_ptr.vmem [resolvable:$true] %s282
          %285 = dma.vmem_to_hbm [thread:$0]  %s283, 16, %s280, [#allocation4]
        $region44: #{tpu_custom_call.1} parent=27 // pred_fallthru
          _
        // Predicated region
        $region45: #{tpu_custom_call.1} parent=27 // pred_check
          %p286 = pneg %p110
        $region46: #{tpu_custom_call.1} parent=27 // pred_check_branch
          %288 = sbr.rel (%p286) target = $region48
        $region47: #{tpu_custom_call.1} parent=27 // pred_region
          %289 = dma.done [#allocation4], 16
        $region48: #{tpu_custom_call.1} parent=27 // pred_fallthru
          _
      $region28: #{tpu_custom_call.1} parent=5 // pred_fallthru
        _
      %p290 = scmp.le.s32.totalorder 2, %s15
      // Predicated region
      $region49: #{tpu_custom_call.1} parent=5 // pred_check
        %p291 = pneg %p290
      $region50: #{tpu_custom_call.1} parent=5 // pred_check_branch
        %293 = sbr.rel (%p291) target = $region52
      $region51: #{tpu_custom_call.1} parent=5 // pred_region
        %s294 = ssub.s32 %s15, 2
      $region52: #{tpu_custom_call.1} parent=5 // pred_fallthru
        _
    $region6: #{tpu_custom_call.1} parent=1 // loop_footer
      %s19 = sadd.s32 1, %s15
    $region7: #{tpu_custom_call.1} parent=1 // loop_footer_branch
      %14 = sbr.rel target = $region3
    $region8: #{tpu_custom_call.1} parent=1 // loop_exit
      _
    %295 = vsyncpa [#allocation3], 1
    %s296 = scalar_lea.sflag [#allocation3], 1
    %297 = vsyncpa %s296, 1
    %298 = vsyncpa [#allocation6], 1
    %s299 = scalar_lea.sflag [#allocation6], 1
    %300 = vsyncpa %s299, 1
    %301 = vsyncpa [#allocation4], 1
    %s302 = scalar_lea.sflag [#allocation4], 1
    %303 = vsyncpa %s302, 1

</llo_original>
